<compile_context>
chip_gen: v7x
topology: tpu7x:2x2x1
jax: 0.10.0
libtpu: 0.0.40
codegen_flags: <defaults>
</compile_context>

<pallas_src>
import functools

import jax
import jax.numpy as jnp
from jax.experimental import pallas as pl
from jax.experimental.pallas import tpu as pltpu

ALPHA = 0.5          # Tversky alpha (default)
BETA = 0.5           # Tversky beta  (default)
EPS = 1e-7           # smp eps (denominator clamp_min)
SMOOTH = 0.0         # smp smooth (default)
IGNORE_INDEX = -100  # SoftBCEWithLogitsLoss default ignore_index
W1 = 0.5
W2 = 0.5

_ACC_W = 512         # accumulator lane width (multiple of 128)


def _round_up(v, m):
    return ((v + m - 1) // m) * m


def _fold(v, acc_w):
    """Fold (tr, tm) -> (tr, acc_w) with lane-aligned static slice-adds (VPU only)."""
    tm = v.shape[-1]
    if tm == acc_w:
        return v
    out = v[:, :acc_w]
    for s in range(1, tm // acc_w):
        out = out + v[:, s * acc_w:(s + 1) * acc_w]
    return out


def _loss_kernel(pred_ref, true_ref, o_inter, o_p, o_t, o_bce, *,
                 hw_valid, lane_tile, acc_w, n_hw_inner, n_hw_blocks,
                 need_mask, has_ignore_index):
    s = pl.program_id(0)            # spatial super-chunk (parallel)
    j = pl.program_id(2)            # spatial inner step  (arbitrary / reduction)
    g = s * n_hw_inner + j          # global spatial block index

    # Output blocks double as (tr, acc_w) accumulators (same block for all j).
    @pl.when(j == 0)
    def _init():
        o_inter[...] = jnp.zeros_like(o_inter)
        o_p[...] = jnp.zeros_like(o_p)
        o_t[...] = jnp.zeros_like(o_t)
        o_bce[...] = jnp.zeros_like(o_bce)

    def _accumulate(masked):
        x = pred_ref[...].astype(jnp.float32)   # (tr, tm) logits
        t = true_ref[...].astype(jnp.float32)   # (tr, tm) targets
        if masked:
            lane = jax.lax.broadcasted_iota(jnp.int32, x.shape, dimension=1)
            m = (g * lane_tile + lane) < hw_valid
            # sanitize possible garbage in the overhanging (padded) lane region
            x = jnp.where(m, x, 0.0)
            t = jnp.where(m, t, 0.0)
            maskf = m.astype(jnp.float32)

        # --- single shared transcendental -----------------------------------
        e = jnp.exp(-jnp.abs(x))
        # SoftBCEWithLogitsLoss (stable): max(x,0) - x*t + log1p(exp(-|x|))
        bce = jnp.maximum(x, 0.0) - x * t + jnp.log1p(e)
        if has_ignore_index:
            bce = bce * (t != float(IGNORE_INDEX)).astype(jnp.float32)
        # stable sigmoid reusing e
        p = jnp.where(x >= 0.0, 1.0, e) / (1.0 + e)
        if masked:
            bce = bce * maskf
            p = p * maskf                        # t already zeroed above

        # fold to acc_w lanes, then a single narrow RMW per quantity
        o_inter[...] += _fold(p * t, acc_w)
        o_p[...] += _fold(p, acc_w)
        o_t[...] += _fold(t, acc_w)
        o_bce[...] += _fold(bce, acc_w)

    if need_mask:
        last = n_hw_blocks - 1       # only the final global block is partial

        @pl.when(g != last)
        def _full():
            _accumulate(False)

        @pl.when(g == last)
        def _tail():
            _accumulate(True)
    else:
        _accumulate(False)


def _hw_caps():
    """Return (streaming VMEM budget, scoped vmem limit, input buffer depth)."""
    try:
        cap = int(pltpu.get_tpu_info().vmem_capacity_bytes)
    except Exception:                       # unknown backend: be v7x-safe
        cap = 64 * 1024 * 1024
    if cap >= 100 * 1024 * 1024:            # v5e / v6e: 128 MiB physical VMEM
        return 40 * 1024 * 1024, 64 * 1024 * 1024, 3
    return 16 * 1024 * 1024, 32 * 1024 * 1024, 2   # v7x: 64 MiB per TC


def bce_and_tversky(y_pred, y_true, *, lane_tile=None, row_tile=32,
                    has_ignore_index=False):
    """y_pred, y_true: NCHW arrays (logits / targets, f32 or bf16). Scalar f32 loss."""
    N, C, H, W = y_pred.shape
    NC, HW = N * C, H * W
    total_elems = N * C * H * W

    # Free reshapes (contiguous NCHW): rows = (n, c) pairs, lanes = h*w.
    p2 = y_pred.reshape(NC, HW)
    t2 = y_true.reshape(NC, HW)

    vmem_budget, vmem_limit, bufs = _hw_caps()

    # ---- row tile: multiple of 8 (or == NC). If the row axis alone gives only
    # one parallel grid step, halve it when legal so v7x's 2nd TC gets work.
    tr = NC if NC <= row_tile else row_tile
    n_row = pl.cdiv(NC, tr)
    if n_row == 1 and NC >= 16 and NC % 16 == 0:
        tr, n_row = NC // 2, 2
    # NOTE: if NC % tr != 0 the last row block over-reads; garbage stays in
    # row-local accumulator rows and is clipped at the output writeback.

    # ---- lane tile: multiple of 128 (and of ACC_W when big), sized so that
    # inputs (2 arrays x bufs buffers) + ~10 f32 tile-sized elementwise
    # temporaries fit the generation-aware streaming budget.
    itemsize = max(jnp.dtype(p2.dtype).itemsize, jnp.dtype(t2.dtype).itemsize)
    per_lane = tr * (2 * bufs * itemsize + 10 * 4)
    tm_cap = max(128, (vmem_budget // per_lane) // 128 * 128)
    tm = min(tm_cap, _round_up(HW, 128))
    if lane_tile is not None:
        tm = min(tm, lane_tile)
    tm = max(128, (tm // 128) * 128)
    if tm >= _ACC_W:
        tm = (tm // _ACC_W) * _ACC_W
        acc_w = _ACC_W
    else:
        acc_w = tm                        # small tile: fold is a no-op
    n_hw = pl.cdiv(HW, tm)
    need_mask = (n_hw * tm != HW)

    # ---- optional spatial super-split: a second "parallel" axis for v7x when
    # the row axis has a single step (pure serial loop elsewhere, so harmless).
    n_super = 1
    if n_row == 1 and n_hw >= 2 and n_hw % 2 == 0:
        n_super = 2
    # TODO(synk): also split odd n_hw (needs a clamped hw index_map).
    n_hw_inner = n_hw // n_super

    bufs = bufs if n_hw_inner >= 3 else 2   # deeper buffering only if it can help

    kernel = functools.partial(
        _loss_kernel, hw_valid=HW, lane_tile=tm, acc_w=acc_w,
        n_hw_inner=n_hw_inner, n_hw_blocks=n_hw,
        need_mask=need_mask, has_ignore_index=has_ignore_index)

    def _in_spec():
        kw = {"pipeline_mode": pl.Buffered(bufs)} if bufs > 2 else {}
        return pl.BlockSpec((tr, tm), lambda s, i, j: (i, s * n_hw_inner + j), **kw)

    stat_shape = jax.ShapeDtypeStruct((n_super, NC, acc_w), jnp.float32)
    stat_spec = pl.BlockSpec((pl.Squeezed(), tr, acc_w), lambda s, i, j: (s, i, 0))

    inter_p, p_p, t_p, bce_p = pl.pallas_call(
        kernel,
        out_shape=(stat_shape,) * 4,
        grid_spec=pltpu.PrefetchScalarGridSpec(
            num_scalar_prefetch=0,
            grid=(n_super, n_row, n_hw_inner),
            in_specs=[_in_spec(), _in_spec()],
            out_specs=(stat_spec,) * 4,
        ),
        compiler_params=pltpu.CompilerParams(
            dimension_semantics=("parallel", "parallel", "arbitrary"),
            vmem_limit_bytes=vmem_limit,
        ),
    )(p2, t2)

    # ---- tiny JAX epilogue: cross-lane reduce of partials + loss assembly ----
    inter = inter_p.sum(axis=(0, 2)).reshape(N, C).sum(axis=0)   # sum(p*t) per class
    psum = p_p.sum(axis=(0, 2)).reshape(N, C).sum(axis=0)        # sum(p)   per class
    tsum = t_p.sum(axis=(0, 2)).reshape(N, C).sum(axis=0)        # sum(t)   per class
    bce_sum = bce_p.sum()

    fp = psum - inter                                            # sum(p*(1-t))
    fn = tsum - inter                                            # sum((1-p)*t)
    denom = inter + ALPHA * fp + BETA * fn + SMOOTH
    score = (inter + SMOOTH) / jnp.maximum(denom, EPS)
    loss_c = (1.0 - score) * (tsum > 0.0)       # classes with no positives drop out
    tversky = jnp.mean(loss_c)
    bce_mean = bce_sum / float(total_elems)
    return (W1 * bce_mean + W2 * tversky).astype(jnp.float32)


def _reference(y_pred, y_true):
    """Pure-JAX reference matching smp SoftBCEWithLogitsLoss + TverskyLoss(multilabel)."""
    x = y_pred.astype(jnp.float32)
    t = y_true.astype(jnp.float32)
    bce = jnp.maximum(x, 0.0) - x * t + jnp.log1p(jnp.exp(-jnp.abs(x)))
    bce = bce * (t != float(IGNORE_INDEX))
    bce_mean = jnp.mean(bce)

    N, C = x.shape[0], x.shape[1]
    p = jax.nn.sigmoid(x).reshape(N, C, -1)
    tt = t.reshape(N, C, -1)
    inter = jnp.sum(p * tt, axis=(0, 2))
    fp = jnp.sum(p * (1.0 - tt), axis=(0, 2))
    fn = jnp.sum((1.0 - p) * tt, axis=(0, 2))
    score = (inter + SMOOTH) / jnp.maximum(inter + ALPHA * fp + BETA * fn + SMOOTH, EPS)
    loss_c = (1.0 - score) * (jnp.sum(tt, axis=(0, 2)) > 0)
    return W1 * bce_mean + W2 * jnp.mean(loss_c)


if __name__ == "__main__":
    key = jax.random.PRNGKey(0)
    k1, k2 = jax.random.split(key)
    N, C, H, W = 2, 4, 16, 16
    y_pred = jax.random.normal(k1, (N, C, H, W), dtype=jnp.float32)           # logits
    y_true = jax.random.bernoulli(k2, 0.3, (N, C, H, W)).astype(jnp.float32)  # {0,1}

    loss = jax.jit(bce_and_tversky)(y_pred, y_true)
    loss = jax.block_until_ready(loss)

    ref = _reference(y_pred, y_true)
    assert jnp.allclose(loss, ref, rtol=1e-5, atol=1e-5), (loss, ref)
    print("KERNEL_OK")
</pallas_src>

<mosaic_0001>
module attributes {stable_mosaic.version = 11 : i64} {
  func.func @_loss_kernel(%arg0: i32, %arg1: i32, %arg2: i32, %arg3: memref<8x256xf32, #tpu.memory_space<vmem>>, %arg4: memref<8x256xf32, #tpu.memory_space<vmem>>, %arg5: memref<1x8x256xf32, #tpu.memory_space<vmem>>, %arg6: memref<1x8x256xf32, #tpu.memory_space<vmem>>, %arg7: memref<1x8x256xf32, #tpu.memory_space<vmem>>, %arg8: memref<1x8x256xf32, #tpu.memory_space<vmem>>) attributes {dimension_semantics = [#tpu.dimension_semantics<parallel>, #tpu.dimension_semantics<parallel>, #tpu.dimension_semantics<arbitrary>], iteration_bounds = array<i64: 1, 1, 1>, scalar_prefetch = 0 : i64, scratch_operands = 0 : i64, tpu.core_type = #tpu.core_type<tc>, window_params = [{transform_indices = @transform_0, window_bounds = array<i64: 8, 256>}, {transform_indices = @transform_1, window_bounds = array<i64: 8, 256>}, {transform_indices = @transform_2, window_bounds = array<i64: 1, 8, 256>}, {transform_indices = @transform_3, window_bounds = array<i64: 1, 8, 256>}, {transform_indices = @transform_4, window_bounds = array<i64: 1, 8, 256>}, {transform_indices = @transform_5, window_bounds = array<i64: 1, 8, 256>}]} {
    %c0_i32 = arith.constant 0 : i32
    %0 = arith.cmpi eq, %arg2, %c0_i32 : i32
    %1 = arith.extui %0 : i1 to i32
    %c0_i32_0 = arith.constant 0 : i32
    %2 = arith.cmpi ne, %1, %c0_i32_0 : i32
    scf.if %2 {
      %cst_32 = arith.constant 0.000000e+00 : f32
      %47 = vector.broadcast %cst_32 : f32 to vector<8x256xf32>
      %c0_33 = arith.constant 0 : index
      %c0_34 = arith.constant 0 : index
      %c0_35 = arith.constant 0 : index
      %48 = vector.load %arg5[%c0_33, %c0_34, %c0_35] : memref<1x8x256xf32, #tpu.memory_space<vmem>>, vector<1x8x256xf32>
      %49 = vector.shape_cast %48 : vector<1x8x256xf32> to vector<8x256xf32>
      %50 = vector.shape_cast %47 : vector<8x256xf32> to vector<1x8x256xf32>
      tpu.vector_store %arg5[%c0_33, %c0_34, %c0_35], %50 {strides = array<i32>} : memref<1x8x256xf32, #tpu.memory_space<vmem>>, vector<1x8x256xf32>,
      %cst_36 = arith.constant 0.000000e+00 : f32
      %51 = vector.broadcast %cst_36 : f32 to vector<8x256xf32>
      %c0_37 = arith.constant 0 : index
      %c0_38 = arith.constant 0 : index
      %c0_39 = arith.constant 0 : index
      %52 = vector.load %arg6[%c0_37, %c0_38, %c0_39] : memref<1x8x256xf32, #tpu.memory_space<vmem>>, vector<1x8x256xf32>
      %53 = vector.shape_cast %52 : vector<1x8x256xf32> to vector<8x256xf32>
      %54 = vector.shape_cast %51 : vector<8x256xf32> to vector<1x8x256xf32>
      tpu.vector_store %arg6[%c0_37, %c0_38, %c0_39], %54 {strides = array<i32>} : memref<1x8x256xf32, #tpu.memory_space<vmem>>, vector<1x8x256xf32>,
      %cst_40 = arith.constant 0.000000e+00 : f32
      %55 = vector.broadcast %cst_40 : f32 to vector<8x256xf32>
      %c0_41 = arith.constant 0 : index
      %c0_42 = arith.constant 0 : index
      %c0_43 = arith.constant 0 : index
      %56 = vector.load %arg7[%c0_41, %c0_42, %c0_43] : memref<1x8x256xf32, #tpu.memory_space<vmem>>, vector<1x8x256xf32>
      %57 = vector.shape_cast %56 : vector<1x8x256xf32> to vector<8x256xf32>
      %58 = vector.shape_cast %55 : vector<8x256xf32> to vector<1x8x256xf32>
      tpu.vector_store %arg7[%c0_41, %c0_42, %c0_43], %58 {strides = array<i32>} : memref<1x8x256xf32, #tpu.memory_space<vmem>>, vector<1x8x256xf32>,
      %cst_44 = arith.constant 0.000000e+00 : f32
      %59 = vector.broadcast %cst_44 : f32 to vector<8x256xf32>
      %c0_45 = arith.constant 0 : index
      %c0_46 = arith.constant 0 : index
      %c0_47 = arith.constant 0 : index
      %60 = vector.load %arg8[%c0_45, %c0_46, %c0_47] : memref<1x8x256xf32, #tpu.memory_space<vmem>>, vector<1x8x256xf32>
      %61 = vector.shape_cast %60 : vector<1x8x256xf32> to vector<8x256xf32>
      %62 = vector.shape_cast %59 : vector<8x256xf32> to vector<1x8x256xf32>
      tpu.vector_store %arg8[%c0_45, %c0_46, %c0_47], %62 {strides = array<i32>} : memref<1x8x256xf32, #tpu.memory_space<vmem>>, vector<1x8x256xf32>,
    } else {
    }
    %c0 = arith.constant 0 : index
    %c0_1 = arith.constant 0 : index
    %3 = vector.load %arg3[%c0, %c0_1] : memref<8x256xf32, #tpu.memory_space<vmem>>, vector<8x256xf32>
    %c0_2 = arith.constant 0 : index
    %c0_3 = arith.constant 0 : index
    %4 = vector.load %arg4[%c0_2, %c0_3] : memref<8x256xf32, #tpu.memory_space<vmem>>, vector<8x256xf32>
    %5 = math.absf %3 : vector<8x256xf32>
    %cst = arith.constant 0.000000e+00 : f32
    %6 = vector.broadcast %cst : f32 to vector<8x256xf32>
    %7 = arith.subf %6, %5 : vector<8x256xf32>
    %8 = math.exp %7 : vector<8x256xf32>
    %cst_4 = arith.constant 0.000000e+00 : f32
    %9 = vector.broadcast %cst_4 : f32 to vector<8x256xf32>
    %10 = arith.maximumf %3, %9 : vector<8x256xf32>
    %11 = arith.mulf %3, %4 : vector<8x256xf32>
    %12 = arith.subf %10, %11 : vector<8x256xf32>
    %13 = math.log1p %8 : vector<8x256xf32>
    %14 = arith.addf %12, %13 : vector<8x256xf32>
    %cst_5 = arith.constant 0.000000e+00 : f32
    %15 = vector.broadcast %cst_5 : f32 to vector<8x256xf32>
    %16 = arith.cmpf oge, %3, %15 : vector<8x256xf32>
    %cst_6 = arith.constant 1.000000e+00 : f32
    %17 = vector.broadcast %cst_6 : f32 to vector<8x256xf32>
    %18 = arith.select %16, %17, %8 : vector<8x256xi1>, vector<8x256xf32>
    %cst_7 = arith.constant 1.000000e+00 : f32
    %19 = vector.broadcast %cst_7 : f32 to vector<8x256xf32>
    %20 = arith.addf %19, %8 : vector<8x256xf32>
    %21 = arith.divf %18, %20 : vector<8x256xf32>
    %c0_8 = arith.constant 0 : index
    %c0_9 = arith.constant 0 : index
    %c0_10 = arith.constant 0 : index
    %22 = vector.load %arg5[%c0_8, %c0_9, %c0_10] : memref<1x8x256xf32, #tpu.memory_space<vmem>>, vector<1x8x256xf32>
    %23 = vector.shape_cast %22 : vector<1x8x256xf32> to vector<8x256xf32>
    %24 = arith.mulf %21, %4 : vector<8x256xf32>
    %25 = arith.addf %23, %24 : vector<8x256xf32>
    %c0_11 = arith.constant 0 : index
    %c0_12 = arith.constant 0 : index
    %c0_13 = arith.constant 0 : index
    %26 = vector.load %arg5[%c0_11, %c0_12, %c0_13] : memref<1x8x256xf32, #tpu.memory_space<vmem>>, vector<1x8x256xf32>
    %27 = vector.shape_cast %26 : vector<1x8x256xf32> to vector<8x256xf32>
    %28 = vector.shape_cast %25 : vector<8x256xf32> to vector<1x8x256xf32>
    tpu.vector_store %arg5[%c0_11, %c0_12, %c0_13], %28 {strides = array<i32>} : memref<1x8x256xf32, #tpu.memory_space<vmem>>, vector<1x8x256xf32>,
    %c0_14 = arith.constant 0 : index
    %c0_15 = arith.constant 0 : index
    %c0_16 = arith.constant 0 : index
    %29 = vector.load %arg6[%c0_14, %c0_15, %c0_16] : memref<1x8x256xf32, #tpu.memory_space<vmem>>, vector<1x8x256xf32>
    %30 = vector.shape_cast %29 : vector<1x8x256xf32> to vector<8x256xf32>
    %31 = arith.addf %30, %21 : vector<8x256xf32>
    %c0_17 = arith.constant 0 : index
    %c0_18 = arith.constant 0 : index
    %c0_19 = arith.constant 0 : index
    %32 = vector.load %arg6[%c0_17, %c0_18, %c0_19] : memref<1x8x256xf32, #tpu.memory_space<vmem>>, vector<1x8x256xf32>
    %33 = vector.shape_cast %32 : vector<1x8x256xf32> to vector<8x256xf32>
    %34 = vector.shape_cast %31 : vector<8x256xf32> to vector<1x8x256xf32>
    tpu.vector_store %arg6[%c0_17, %c0_18, %c0_19], %34 {strides = array<i32>} : memref<1x8x256xf32, #tpu.memory_space<vmem>>, vector<1x8x256xf32>,
    %c0_20 = arith.constant 0 : index
    %c0_21 = arith.constant 0 : index
    %c0_22 = arith.constant 0 : index
    %35 = vector.load %arg7[%c0_20, %c0_21, %c0_22] : memref<1x8x256xf32, #tpu.memory_space<vmem>>, vector<1x8x256xf32>
    %36 = vector.shape_cast %35 : vector<1x8x256xf32> to vector<8x256xf32>
    %37 = arith.addf %36, %4 : vector<8x256xf32>
    %c0_23 = arith.constant 0 : index
    %c0_24 = arith.constant 0 : index
    %c0_25 = arith.constant 0 : index
    %38 = vector.load %arg7[%c0_23, %c0_24, %c0_25] : memref<1x8x256xf32, #tpu.memory_space<vmem>>, vector<1x8x256xf32>
    %39 = vector.shape_cast %38 : vector<1x8x256xf32> to vector<8x256xf32>
    %40 = vector.shape_cast %37 : vector<8x256xf32> to vector<1x8x256xf32>
    tpu.vector_store %arg7[%c0_23, %c0_24, %c0_25], %40 {strides = array<i32>} : memref<1x8x256xf32, #tpu.memory_space<vmem>>, vector<1x8x256xf32>,
    %c0_26 = arith.constant 0 : index
    %c0_27 = arith.constant 0 : index
    %c0_28 = arith.constant 0 : index
    %41 = vector.load %arg8[%c0_26, %c0_27, %c0_28] : memref<1x8x256xf32, #tpu.memory_space<vmem>>, vector<1x8x256xf32>
    %42 = vector.shape_cast %41 : vector<1x8x256xf32> to vector<8x256xf32>
    %43 = arith.addf %42, %14 : vector<8x256xf32>
    %c0_29 = arith.constant 0 : index
    %c0_30 = arith.constant 0 : index
    %c0_31 = arith.constant 0 : index
    %44 = vector.load %arg8[%c0_29, %c0_30, %c0_31] : memref<1x8x256xf32, #tpu.memory_space<vmem>>, vector<1x8x256xf32>
    %45 = vector.shape_cast %44 : vector<1x8x256xf32> to vector<8x256xf32>
    %46 = vector.shape_cast %43 : vector<8x256xf32> to vector<1x8x256xf32>
    tpu.vector_store %arg8[%c0_29, %c0_30, %c0_31], %46 {strides = array<i32>} : memref<1x8x256xf32, #tpu.memory_space<vmem>>, vector<1x8x256xf32>,
    return
  }
  func.func @transform_0(%arg0: i32, %arg1: i32, %arg2: i32) -> (i32, i32) {
    %c1_i32 = arith.constant 1 : i32
    %0 = arith.muli %arg0, %c1_i32 : i32
    %1 = arith.addi %0, %arg2 : i32
    %c0_i32 = arith.constant 0 : i32
    return %arg1, %1 : i32, i32
  }
  func.func @transform_1(%arg0: i32, %arg1: i32, %arg2: i32) -> (i32, i32) {
    %c1_i32 = arith.constant 1 : i32
    %0 = arith.muli %arg0, %c1_i32 : i32
    %1 = arith.addi %0, %arg2 : i32
    %c0_i32 = arith.constant 0 : i32
    return %arg1, %1 : i32, i32
  }
  func.func @transform_2(%arg0: i32, %arg1: i32, %arg2: i32) -> (i32, i32, i32) {
    %c0_i32 = arith.constant 0 : i32
    %c0_i32_0 = arith.constant 0 : i32
    return %arg0, %arg1, %c0_i32 : i32, i32, i32
  }
  func.func @transform_3(%arg0: i32, %arg1: i32, %arg2: i32) -> (i32, i32, i32) {
    %c0_i32 = arith.constant 0 : i32
    %c0_i32_0 = arith.constant 0 : i32
    return %arg0, %arg1, %c0_i32 : i32, i32, i32
  }
  func.func @transform_4(%arg0: i32, %arg1: i32, %arg2: i32) -> (i32, i32, i32) {
    %c0_i32 = arith.constant 0 : i32
    %c0_i32_0 = arith.constant 0 : i32
    return %arg0, %arg1, %c0_i32 : i32, i32, i32
  }
  func.func @transform_5(%arg0: i32, %arg1: i32, %arg2: i32) -> (i32, i32, i32) {
    %c0_i32 = arith.constant 0 : i32
    %c0_i32_0 = arith.constant 0 : i32
    return %arg0, %arg1, %c0_i32 : i32, i32, i32
  }
}

</mosaic_0001>

<llo_original>
// kernel: bce_and_tversky.1
$region0: #{bce_and_tversky.1}
  #allocation0 [shape = 'u32[]', space=smem, size = 0x4, offset = 0x4, fixed_abs, tag = 'smem constant byte address 0x4 - core index']
  #allocation1 [shape = 'u32[144,128]{1,0:T(1,128)}', space=vmem, size = 0x12000, scoped, tag = 'internal scratch']
  %s0 = inlined_call_operand.vmem [shape: f32[8,256], index: 0, kind: input, shape index: {}]
  %s1 = inlined_call_operand.vmem [shape: f32[8,256], index: 1, kind: input, shape index: {}]
  %s2 = inlined_call_operand.vmem [shape: f32[1,8,256], index: 2, kind: output, shape index: {0}]
  %s3 = inlined_call_operand.vmem [shape: f32[1,8,256], index: 3, kind: output, shape index: {1}]
  %s4 = inlined_call_operand.vmem [shape: f32[1,8,256], index: 4, kind: output, shape index: {2}]
  %s5 = inlined_call_operand.vmem [shape: f32[1,8,256], index: 5, kind: output, shape index: {3}]
  %6 = xla_tuple %s2, %s3, %s4, %s5
  %s7 = sld [smem:[#allocation0]]
  $region46: #{bce_and_tversky.1} parent=0
    _
  %s9 = ssub.s32 1, %s7
  %s10 = scalar_select 0, %s9, %s7
  // Predicated region
  $region2: #{bce_and_tversky.1} parent=0 // pred_check
    _
  $region3: #{bce_and_tversky.1} parent=0 // pred_check_branch
    %12 = sbr.rel (0) target = $region5
  $region4: #{bce_and_tversky.1} parent=0 // pred_region
    %s13 = sadd.s32 0, 0
    %s14 = smul.u32 2, %s13
    %p15 = scmp.lt.s32.totalorder %s14, 1
    %s16 = scalar_select %p15, %s14, 1
    %s17 = smul.addr %s16, 8
    %s18 = scalar_lea.vmem %s0, %s17
    %s19 = sadd.s32 0, 0
    %s20 = smul.u32 2, %s19
  $region5: #{bce_and_tversky.1} parent=0 // pred_fallthru
    _
  // Predicated region
  $region6: #{bce_and_tversky.1} parent=0 // pred_check
    _
  $region7: #{bce_and_tversky.1} parent=0 // pred_check_branch
    %22 = sbr.rel (0) target = $region9
  $region8: #{bce_and_tversky.1} parent=0 // pred_region
    %s23 = sadd.s32 0, 0
    %s24 = smul.u32 2, %s23
    %p25 = scmp.lt.s32.totalorder %s24, 1
    %s26 = scalar_select %p25, %s24, 1
    %s27 = smul.addr %s26, 8
    %s28 = scalar_lea.vmem %s1, %s27
    %s29 = sadd.s32 0, 0
    %s30 = smul.u32 2, %s29
  $region9: #{bce_and_tversky.1} parent=0 // pred_fallthru
    _
  %s31 = sadd.s32 0, 0
  %s32 = smul.u32 2, %s31
  %p33 = scmp.lt.s32.totalorder %s32, 1
  %s34 = scalar_select %p33, %s32, 1
  %s35 = smul.addr %s34, 8
  %s36 = scalar_lea.vmem %s0, %s35
  %s37 = sadd.s32 0, 0
  %s38 = smul.u32 2, %s37
  %p39 = scmp.lt.s32.totalorder %s38, 1
  %s40 = scalar_select %p39, %s38, 1
  %s41 = smul.addr %s40, 8
  %s42 = scalar_lea.vmem %s1, %s41
  %s43 = sadd.s32 0, 0
  %s44 = smul.u32 2, %s43
  %p45 = scmp.lt.s32.totalorder %s44, 1
  %s46 = scalar_select %p45, %s44, 1
  %s47 = smul.addr %s46, 8
  %s48 = scalar_lea.vmem %s0, %s47
  %s49 = sadd.s32 0, 0
  %s50 = smul.u32 2, %s49
  %s51 = sadd.s32 0, 0
  %s52 = smul.u32 2, %s51
  %p53 = scmp.lt.s32.totalorder %s52, 1
  %s54 = scalar_select %p53, %s52, 1
  %s55 = smul.addr %s54, 8
  %s56 = scalar_lea.vmem %s1, %s55
  %s57 = sadd.s32 0, 0
  %s58 = smul.u32 2, %s57
  %p59 = scmp.eq.s32.totalorder 0, 0
  // Predicated region
  $region10: #{bce_and_tversky.1} parent=0 // pred_check
    %p60 = pneg %p59
  $region11: #{bce_and_tversky.1} parent=0 // pred_check_branch
    %62 = sbr.rel (%p60) target = $region13
  $region12: #{bce_and_tversky.1} parent=0 // pred_region
    %63 = vst [vmem:[%s2] sm:$0xff] 0.0
    %64 = vst [vmem:[%s2 + $0x8] sm:$0xff] 0.0
    %65 = vst [vmem:[%s3] sm:$0xff] 0.0
    %66 = vst [vmem:[%s3 + $0x8] sm:$0xff] 0.0
    %67 = vst [vmem:[%s4] sm:$0xff] 0.0
    %68 = vst [vmem:[%s4 + $0x8] sm:$0xff] 0.0
    %69 = vst [vmem:[%s5] sm:$0xff] 0.0
    %70 = vst [vmem:[%s5 + $0x8] sm:$0xff] 0.0
  $region13: #{bce_and_tversky.1} parent=0 // pred_fallthru
    _
  %v71 = vld [vmem:[%s48] sm:$0xff]
  %v72 = vld [vmem:[%s48 + $0x8] sm:$0xff]
  %v73 = vld [vmem:[%s56] sm:$0xff]
  %v74 = vld [vmem:[%s56 + $0x8] sm:$0xff]
  %v75 = vand.u32 2147483647, %v71
  %v76 = vand.u32 2147483647, %v72
  %v77 = vsub.f32 0.0, %v75
  %v78 = vsub.f32 0.0, %v76
  %v79 = vmul.f32 %v77, 1.442695
  %v80 = vpow.pop %v79
  %v81 = vmul.f32 %v78, 1.442695
  %v82 = vpow.pop %v81
  %v83 = vmax.f32 %v71, 0.0
  %v84 = vmax.f32 %v72, 0.0
  %v85 = vmul.f32 %v71, %v73
  %v86 = vmul.f32 %v72, %v74
  %v87 = vsub.f32 %v83, %v85
  %v88 = vsub.f32 %v84, %v86
  %v89 = vadd.f32 %v80, 1.0
  %v90 = vlog2.pop %v89
  %v91 = vmul.f32 %v90, 0.6931472
  %v92 = vmul.f32 -0.5, %v80
  %v93 = vadd.f32 %v92, 1.0
  %v94 = vmul.f32 %v93, %v80
  %v95 = vand.u32 2147483647, %v80
  %vm96 = vcmp.lt.f32.partialorder %v95, 0.0004427343
  %v97 = vsel %vm96, %v94, %v91
  %v98 = vadd.f32 %v82, 1.0
  %v99 = vlog2.pop %v98
  %v100 = vmul.f32 %v99, 0.6931472
  %v101 = vmul.f32 -0.5, %v82
  %v102 = vadd.f32 %v101, 1.0
  %v103 = vmul.f32 %v102, %v82
  %v104 = vand.u32 2147483647, %v82
  %vm105 = vcmp.lt.f32.partialorder %v104, 0.0004427343
  %v106 = vsel %vm105, %v103, %v100
  %v107 = vadd.f32 %v87, %v97
  %v108 = vadd.f32 %v88, %v106
  %vm109 = vcmp.ge.f32.partialorder %v71, 0.0
  %vm110 = vcmp.ge.f32.partialorder %v72, 0.0
  %v111 = vsel %vm109, 1.0, %v80
  %v112 = vsel %vm110, 1.0, %v82
  %v113 = vadd.f32 %v80, 1.0
  %v114 = vadd.f32 %v82, 1.0
  %v115 = vrcp.pop %v113
  %v116 = vmul.f32 %v111, %v115
  %v117 = vrcp.pop %v114
  %v118 = vmul.f32 %v112, %v117
  %v119 = vld [vmem:[%s2] sm:$0xff]
  %v120 = vld [vmem:[%s2 + $0x8] sm:$0xff]
  %v121 = vmul.f32 %v116, %v73
  %v122 = vmul.f32 %v118, %v74
  %v123 = vadd.f32 %v119, %v121
  %v124 = vadd.f32 %v120, %v122
  %125 = vst [vmem:[%s2] sm:$0xff] %v123
  %126 = vst [vmem:[%s2 + $0x8] sm:$0xff] %v124
  %v127 = vld [vmem:[%s3] sm:$0xff]
  %v128 = vld [vmem:[%s3 + $0x8] sm:$0xff]
  %v129 = vadd.f32 %v127, %v116
  %v130 = vadd.f32 %v128, %v118
  %131 = vst [vmem:[%s3] sm:$0xff] %v129
  %132 = vst [vmem:[%s3 + $0x8] sm:$0xff] %v130
  %v133 = vld [vmem:[%s4] sm:$0xff]
  %v134 = vld [vmem:[%s4 + $0x8] sm:$0xff]
  %v135 = vadd.f32 %v133, %v73
  %v136 = vadd.f32 %v134, %v74
  %137 = vst [vmem:[%s4] sm:$0xff] %v135
  %138 = vst [vmem:[%s4 + $0x8] sm:$0xff] %v136
  %v139 = vld [vmem:[%s5] sm:$0xff]
  %v140 = vld [vmem:[%s5 + $0x8] sm:$0xff]
  %v141 = vadd.f32 %v139, %v107
  %v142 = vadd.f32 %v140, %v108
  %143 = vst [vmem:[%s5] sm:$0xff] %v141
  %144 = vst [vmem:[%s5 + $0x8] sm:$0xff] %v142
  // Predicated region
  $region14: #{bce_and_tversky.1} parent=0 // pred_check
    _
  $region15: #{bce_and_tversky.1} parent=0 // pred_check_branch
    %146 = sbr.rel (0) target = $region17
  $region16: #{bce_and_tversky.1} parent=0 // pred_region
    _
  $region17: #{bce_and_tversky.1} parent=0 // pred_fallthru
    _
  // Predicated region
  $region18: #{bce_and_tversky.1} parent=0 // pred_check
    _
  $region19: #{bce_and_tversky.1} parent=0 // pred_check_branch
    %148 = sbr.rel (0) target = $region21
  $region20: #{bce_and_tversky.1} parent=0 // pred_region
    _
  $region21: #{bce_and_tversky.1} parent=0 // pred_fallthru
    _
  // Predicated region
  $region22: #{bce_and_tversky.1} parent=0 // pred_check
    _
  $region23: #{bce_and_tversky.1} parent=0 // pred_check_branch
    %150 = sbr.rel (0) target = $region25
  $region24: #{bce_and_tversky.1} parent=0 // pred_region
    _
  $region25: #{bce_and_tversky.1} parent=0 // pred_fallthru
    _
  // Predicated region
  $region26: #{bce_and_tversky.1} parent=0 // pred_check
    _
  $region27: #{bce_and_tversky.1} parent=0 // pred_check_branch
    %152 = sbr.rel (0) target = $region29
  $region28: #{bce_and_tversky.1} parent=0 // pred_region
    _
  $region29: #{bce_and_tversky.1} parent=0 // pred_fallthru
    _
  // Predicated region
  $region30: #{bce_and_tversky.1} parent=0 // pred_check
    _
  $region31: #{bce_and_tversky.1} parent=0 // pred_check_branch
    %154 = sbr.rel (0) target = $region33
  $region32: #{bce_and_tversky.1} parent=0 // pred_region
    _
  $region33: #{bce_and_tversky.1} parent=0 // pred_fallthru
    _
  // Predicated region
  $region34: #{bce_and_tversky.1} parent=0 // pred_check
    _
  $region35: #{bce_and_tversky.1} parent=0 // pred_check_branch
    %156 = sbr.rel (0) target = $region37
  $region36: #{bce_and_tversky.1} parent=0 // pred_region
    _
  $region37: #{bce_and_tversky.1} parent=0 // pred_fallthru
    _
  // Predicated region
  $region38: #{bce_and_tversky.1} parent=0 // pred_check
    _
  $region39: #{bce_and_tversky.1} parent=0 // pred_check_branch
    %158 = sbr.rel (0) target = $region41
  $region40: #{bce_and_tversky.1} parent=0 // pred_region
    _
  $region41: #{bce_and_tversky.1} parent=0 // pred_fallthru
    _
  // Predicated region
  $region42: #{bce_and_tversky.1} parent=0 // pred_check
    _
  $region43: #{bce_and_tversky.1} parent=0 // pred_check_branch
    %160 = sbr.rel (0) target = $region45
  $region44: #{bce_and_tversky.1} parent=0 // pred_region
    _
  $region45: #{bce_and_tversky.1} parent=0 // pred_fallthru
    _

</llo_original>
